<compile_context>
chip_gen: v7x
topology: tpu7x:2x2x1
jax: 0.10.0
libtpu: 0.0.40
codegen_flags: <defaults>
</compile_context>

<pallas_src>
import jax
import jax.numpy as jnp
from jax.experimental import pallas as pl
from jax.experimental.pallas import tpu as pltpu


def _model_kernel(w_ref, x2_ref, o_ref):
    # w_ref: (2,) f32 in SMEM  -> scalar-unit reads, no vector-load slots used.
    # x2_ref, o_ref: (1, 1) f32 tiles in VMEM.
    w_sum = w_ref[0] + w_ref[1]                      # scalar add on the scalar ALU
    o_ref[...] = jnp.maximum(x2_ref[...] * w_sum, 0.0)


def model_forward(x1, x2, w1, w2):
    """x1, x2: (1, 1, 1) f32; w1, w2: (1, 1) f32 (torch Linear(1,1,bias=False) weights).

    Returns a 0-d scalar, matching torch.squeeze of the (1, 1, 1) result.
    x1 is accepted for API fidelity but is unused (dead branch in the torch forward).
    """
    del x1  # dead in the PyTorch forward; not DMA'd, not computed.

    x2_2d = x2.reshape(1, 1).astype(jnp.float32)
    w_packed = jnp.stack(
        [w1.reshape(()), w2.reshape(())]
    ).astype(jnp.float32)                            # (2,) scalar weights -> SMEM

    out_2d = pl.pallas_call(
        _model_kernel,
        out_shape=jax.ShapeDtypeStruct((1, 1), jnp.float32),
        in_specs=[
            pl.BlockSpec(memory_space=pltpu.MemorySpace.SMEM),   # weights (scalars)
            pl.BlockSpec(memory_space=pltpu.MemorySpace.VMEM),   # x2 tile
        ],
        out_specs=pl.BlockSpec(memory_space=pltpu.MemorySpace.VMEM),
    )(w_packed, x2_2d)

    # torch.squeeze of a (1, 1, 1) linear output -> 0-d scalar
    return jnp.squeeze(out_2d)


if __name__ == "__main__":
    key = jax.random.PRNGKey(0)
    k1, k2, k3, k4 = jax.random.split(key, 4)

    # Inputs matching torch.randn(1, 1, 1)
    x1 = jax.random.normal(k1, (1, 1, 1), dtype=jnp.float32)
    x2 = jax.random.normal(k2, (1, 1, 1), dtype=jnp.float32)

    # Deterministic "parameters" for Linear(1, 1, bias=False): weight shape (1, 1)
    w1 = jax.random.normal(k3, (1, 1), dtype=jnp.float32)
    w2 = jax.random.normal(k4, (1, 1), dtype=jnp.float32)

    out = model_forward(x1, x2, w1, w2)
    out = jax.block_until_ready(out)

    # Reference check in plain JAX (same math as the PyTorch forward's live path).
    ref = jnp.maximum(
        jnp.squeeze(x2 * w1[0, 0]) + jnp.squeeze(x2 * w2[0, 0]), 0.0
    )
    assert out.shape == ()
    assert jnp.allclose(out, ref, atol=1e-6), (out, ref)

    print("KERNEL_OK")
</pallas_src>

<mosaic_0001>
module attributes {stable_mosaic.version = 11 : i64} {
  func.func @_model_kernel(%arg0: memref<2xf32, #tpu.memory_space<smem>>, %arg1: memref<1x1xf32, #tpu.memory_space<vmem>>, %arg2: memref<1x1xf32, #tpu.memory_space<vmem>>) attributes {dimension_semantics = [], scalar_prefetch = 0 : i64, scratch_operands = 0 : i64, tpu.core_type = #tpu.core_type<tc>} {
    %c0 = arith.constant 0 : index
    %0 = memref.load %arg0[%c0] : memref<2xf32, #tpu.memory_space<smem>>
    %c1 = arith.constant 1 : index
    %1 = memref.load %arg0[%c1] : memref<2xf32, #tpu.memory_space<smem>>
    %2 = arith.addf %0, %1 : f32
    %c0_0 = arith.constant 0 : index
    %c0_1 = arith.constant 0 : index
    %3 = vector.load %arg1[%c0_0, %c0_1] : memref<1x1xf32, #tpu.memory_space<vmem>>, vector<1x1xf32>
    %4 = vector.broadcast %2 : f32 to vector<1x1xf32>
    %5 = arith.mulf %3, %4 : vector<1x1xf32>
    %cst = arith.constant 0.000000e+00 : f32
    %6 = vector.broadcast %cst : f32 to vector<1x1xf32>
    %7 = arith.maximumf %5, %6 : vector<1x1xf32>
    %c0_2 = arith.constant 0 : index
    %c0_3 = arith.constant 0 : index
    %8 = vector.load %arg2[%c0_2, %c0_3] : memref<1x1xf32, #tpu.memory_space<vmem>>, vector<1x1xf32>
    tpu.vector_store %arg2[%c0_2, %c0_3], %7 {strides = array<i32>} : memref<1x1xf32, #tpu.memory_space<vmem>>, vector<1x1xf32>,
    return
  }
}

</mosaic_0001>

<llo_original>
// kernel: tpu_custom_call.1
$region0: #{tpu_custom_call.1}
  #allocation0 [shape = 'u32[]', space=smem, size = 0x4, offset = 0x4, fixed_abs, tag = 'smem constant byte address 0x4 - core index']
  #allocation1 [shape = 'u32[144,128]{1,0:T(1,128)}', space=vmem, size = 0x12000, scoped, tag = 'internal scratch']
  #allocation2 [shape = 'f32[1,1]{1,0:T(1,128)S(1)}', space=vmem, size = 0x200, scoped, tag = 'scoped memory for tpu_custom_call.1']
  %s0 = inlined_call_operand.vmem [shape: f32[2], index: 0, kind: input, shape index: {}]
  %s1 = inlined_call_operand.<no memory space> [shape: f32[1,1], index: 1, kind: input, shape index: {}]
  %s2 = inlined_call_operand.hbm [shape: f32[1,1], index: 2, kind: output, shape index: {}]
  %s3 = sld [smem:[#allocation0]]
  $region22: #{tpu_custom_call.1} parent=0
    _
  %s5 = ssub.s32 1, %s3
  %s6 = scalar_select 0, %s5, %s3
  %v7 = vstv %s1
  %8 = vst [vmem:[#allocation2] sm:$0x1] %v7
  $region1: #{tpu_custom_call.1} parent=0
    #allocation3 [shape = 'u8[512]{0}', space=smem, size = 0x200, scoped, tag = 'input window, operand 0, single buffered']
    #allocation4 [shape = 's32[1]{0}', space=sflag, size = 0x4, scoped, tag = 'scoped memory for tpu_custom_call.1']
    #allocation5 [shape = 's32[1]{0}', space=sflag, size = 0x4, scoped, tag = 'scoped memory for tpu_custom_call.1']
    #allocation6 [shape = 'u8[512]{0}', space=vmem, size = 0x400, scoped, tag = 'output window, operand 0, single buffered']
    %9 = vsyncpa [#allocation5], 0
    %10 = vsyncpa [#allocation4], 0
    // Predicated region
    $region2: #{tpu_custom_call.1} parent=1 // pred_check
      _
    $region3: #{tpu_custom_call.1} parent=1 // pred_check_branch
      %12 = sbr.rel (0) target = $region5
    $region4: #{tpu_custom_call.1} parent=1 // pred_region
      %s14 = ssub.s32 16, 16
      %15 = vsyncadd [#allocation5], %s14
      %s17 = sshll.u32 %s0, 4
      %s18 = int_to_ptr.vmem [resolvable:$true] %s17
      %20 = dma.vmem_to_smem %s18, 16, [#allocation3], [#allocation5]
    $region5: #{tpu_custom_call.1} parent=1 // pred_fallthru
      _
    // Predicated region
    $region6: #{tpu_custom_call.1} parent=1 // pred_check
      _
    $region7: #{tpu_custom_call.1} parent=1 // pred_check_branch
      %22 = sbr.rel (0) target = $region9
    $region8: #{tpu_custom_call.1} parent=1 // pred_region
      _
    $region9: #{tpu_custom_call.1} parent=1 // pred_fallthru
      _
    // Predicated region
    $region10: #{tpu_custom_call.1} parent=1 // pred_check
      _
    $region11: #{tpu_custom_call.1} parent=1 // pred_check_branch
      %24 = sbr.rel (0) target = $region13
    $region12: #{tpu_custom_call.1} parent=1 // pred_region
      %25 = dma.done [#allocation5], 16
    $region13: #{tpu_custom_call.1} parent=1 // pred_fallthru
      _
    %26 = sfence
    %s27 = sld [smem:[#allocation3]]
    %s28 = sld [smem:[#allocation3 + $0x1]]
    %s29 = sadd.f32 %s27, %s28
    %v30 = vld [vmem:[#allocation2] sm:$0x1]
    %v31 = vstv %s29
    %v32 = vmul.f32 %v30, %v31
    %v33 = vmax.f32 %v32, 0.0
    %vm34 = vcmask 0
    %35 = vst.msk [vmem:[#allocation6] sm:$0x1] %vm34, %v33
    // Predicated region
    $region14: #{tpu_custom_call.1} parent=1 // pred_check
      _
    $region15: #{tpu_custom_call.1} parent=1 // pred_check_branch
      %37 = sbr.rel (0) target = $region17
    $region16: #{tpu_custom_call.1} parent=1 // pred_region
      %s39 = ssub.s32 16, 16
      %40 = vsyncadd [#allocation4], %s39
      %s42 = sshll.u32 [#allocation6], 4
      %s43 = int_to_ptr.vmem [resolvable:$true] %s42
      %45 = dma.vmem_to_hbm [thread:$0]  %s43, 16, %s2, [#allocation4]
    $region17: #{tpu_custom_call.1} parent=1 // pred_fallthru
      _
    // Predicated region
    $region18: #{tpu_custom_call.1} parent=1 // pred_check
      _
    $region19: #{tpu_custom_call.1} parent=1 // pred_check_branch
      %47 = sbr.rel (0) target = $region21
    $region20: #{tpu_custom_call.1} parent=1 // pred_region
      %48 = dma.done [#allocation4], 16
    $region21: #{tpu_custom_call.1} parent=1 // pred_fallthru
      _
    %49 = vsyncpa [#allocation4], 1
    %50 = vsyncpa [#allocation5], 1

</llo_original>
